<compile_context>
chip_gen: v7x
topology: tpu7x:2x2x1
jax: 0.10.0
libtpu: 0.0.40
codegen_flags: <defaults>
</compile_context>

<pallas_src>
import functools
import math

import numpy as np
import jax
import jax.numpy as jnp
from jax.experimental import pallas as pl
from jax.experimental.pallas import tpu as pltpu


_VMEM = pl.BlockSpec(memory_space=pltpu.MemorySpace.VMEM)


def _round_up(x, m):
    return (x + m - 1) // m * m


# --------------------------- in-kernel forward core ---------------------------

def _forward_core(x_ref, slab_ref, p_ref, *, hidden, out_size, rows_t):
    """Fused Linear(+bias)->ReLU->LayerNorm for both branches + pooling + out proj.

    x_ref    : (R, K_pad)        block-diag [bert | 1 | img | 1] design matrix
    slab_ref : (K_pad+H+8, Wmax) packed params (see NELModelPallas.__init__)
    p_ref    : (3B, R)           pooling matrix (fusion / ct_text / ct_img rows)
    """
    H, O = hidden, out_size
    k_pad = x_ref.shape[1]
    vec0 = k_pad + H                      # 8-aligned by construction

    slab = slab_ref[...]                  # single load, static value slices below
    w_cat = slab[0:k_pad, 0:H]            # [w_txt; b_txt; w_img; b_img; 0-pad]
    w_out = slab[k_pad:vec0, 0:O]
    g_txt = slab[vec0 + 0:vec0 + 1, 0:H]
    beta_txt = slab[vec0 + 1:vec0 + 2, 0:H]
    g_img = slab[vec0 + 2:vec0 + 3, 0:H]
    beta_img = slab[vec0 + 3:vec0 + 4, 0:H]
    b_out = slab[vec0 + 4:vec0 + 5, 0:O]

    x = x_ref[...]                        # (R, K_pad)
    # One MXU push does both Linear branches; biases ride in via the 1-columns.
    y = jnp.dot(x, w_cat, preferred_element_type=jnp.float32)     # (R, H)
    y = jnp.maximum(y, 0.0)                                       # ReLU
    mu = jnp.mean(y, axis=-1, keepdims=True)                      # LayerNorm
    var = jnp.mean((y - mu) ** 2, axis=-1, keepdims=True)
    y_hat = (y - mu) * jax.lax.rsqrt(var + 1e-5)                  # torch LN eps
    row = jax.lax.broadcasted_iota(jnp.int32, (x.shape[0], H), 0)
    is_txt = row < rows_t
    z = (y_hat * jnp.where(is_txt, g_txt, g_img)
         + jnp.where(is_txt, beta_txt, beta_img))                 # (R, H)
    # Dropout == identity (inference semantics).

    # All row-range means (seq_feat narrow + mean, img mean, contrastive means)
    # as one tiny matmul against the constant pooling matrix.
    pooled = jnp.dot(p_ref[...], z, preferred_element_type=jnp.float32)  # (3B, H)
    b = p_ref.shape[0] // 3

    # TODO(synk): WordLevel/PhraseLevel/SentLevel/GatedFusion definitions are not
    # provided in the reference source; mean-pool fusion placeholder.
    fusion = pooled[0:b]                                           # (B, H)
    query = jnp.dot(fusion, w_out, preferred_element_type=jnp.float32) + b_out
    return pooled, query


# --------------------------------- kernels ------------------------------------

def _infer_kernel(x_ref, slab_ref, p_ref, q_ref, *, hidden, out_size, rows_t):
    _, query = _forward_core(x_ref, slab_ref, p_ref,
                             hidden=hidden, out_size=out_size, rows_t=rows_t)
    q_ref[...] = query


def _train_kernel(x_ref, slab_ref, p_ref, pn_ref, out_ref, *,
                  hidden, out_size, rows_t, inv_temp, diag_exp, margin):
    pooled, query = _forward_core(x_ref, slab_ref, p_ref,
                                  hidden=hidden, out_size=out_size, rows_t=rows_t)
    b = p_ref.shape[0] // 3

    # ---- Contrastive_loss (exact torch reference: masked-diag row sums, and
    # the positive similarity is ALSO subtracted from the denominator). ----
    tv = pooled[b:3 * b]                         # rows: [ct_text (B); ct_img (B)]
    # F.normalize(eps=1e-12): x / max(||x||,1e-12) == x * rsqrt(max(sumsq,1e-24))
    tv = tv * jax.lax.rsqrt(jnp.maximum(jnp.sum(tv * tv, axis=-1, keepdims=True),
                                        1e-24))
    sim = jax.lax.dot_general(tv, tv, (((1,), (1,)), ((), ())),
                              preferred_element_type=jnp.float32)   # (2B, 2B)
    sim = jnp.exp(sim * inv_temp)
    # Rows of tv are unit-norm, so every diagonal entry is exp(1/T): use the
    # pre-computed Python constant instead of a per-row gather + exp.
    row_sum = jnp.sum(sim, axis=-1, keepdims=True) - diag_exp
    t = tv[0:b]
    v = tv[b:2 * b]
    pos = jnp.exp(jnp.sum(t * v, axis=-1, keepdims=True) * inv_temp)  # (B, 1)
    pos2 = jnp.concatenate([pos, pos], axis=0)                        # (2B, 1)
    ct_loss = jnp.mean(-jnp.log(pos2 / (row_sum - pos2)))

    # ---- nn.TripletMarginLoss (p=2; torch adds eps=1e-6 to the difference) ----
    pn = pn_ref[...]                              # (2B, O): [pos; neg]
    d_pos = jnp.sqrt(jnp.sum((query - pn[0:b] + 1e-6) ** 2, axis=-1))
    d_neg = jnp.sqrt(jnp.sum((query - pn[b:2 * b] + 1e-6) ** 2, axis=-1))
    tp_loss = jnp.mean(jnp.maximum(d_pos - d_neg + margin, 0.0))

    loss = tp_loss + ct_loss
    # Pack query rows + scalar loss into one (B+1, O) tile: one output DMA.
    out_ref[...] = jnp.concatenate(
        [query, jnp.broadcast_to(loss, (1, query.shape[1]))], axis=0)


# --------------------------------- model wrapper ----------------------------------

class NELModelPallas:
    def __init__(self, key, hidden_size=32, output_size=32, seq_len=8,
                 text_feat_size=48, img_feat_size=40, loss_margin=0.5,
                 temperature=0.6):
        self.hidden_size = hidden_size
        self.output_size = output_size
        self.seq_len = seq_len
        self.text_feat_size = text_feat_size
        self.img_feat_size = img_feat_size
        self.loss_margin = loss_margin
        self.temperature = temperature     # hard-coded 0.6 in the torch call
        # TODO(synk): loss_function == 'circle' (CircleLoss) has no provided
        # definition; only the triplet branch (loss_p=2) is implemented.

        H, O, Ft, Fi = hidden_size, output_size, text_feat_size, img_feat_size
        ks = jax.random.split(key, 3)
        w_txt = 0.02 * jax.random.normal(ks[0], (Ft, H), jnp.float32)
        w_img = 0.02 * jax.random.normal(ks[1], (Fi, H), jnp.float32)
        w_out = 0.02 * jax.random.normal(ks[2], (H, O), jnp.float32)
        b_txt = np.zeros((H,), np.float32)
        b_img = np.zeros((H,), np.float32)
        b_out = np.zeros((O,), np.float32)
        g_txt = np.ones((H,), np.float32)
        beta_txt = np.zeros((H,), np.float32)
        g_img = np.ones((H,), np.float32)
        beta_img = np.zeros((H,), np.float32)

        # ---- one packed parameter slab (single input DMA, 8-aligned slices) ----
        # rows: [w_txt(Ft); b_txt(1); w_img(Fi); b_img(1); pad -> K_pad;
        #        w_out(H); g_txt; beta_txt; g_img; beta_img; b_out; pad -> +8]
        K = Ft + 1 + Fi + 1
        self._k_pad = _round_up(K, 8)
        wmax = max(H, O)
        slab = np.zeros((self._k_pad + H + 8, wmax), np.float32)
        slab[0:Ft, 0:H] = np.asarray(w_txt)
        slab[Ft, 0:H] = b_txt
        slab[Ft + 1:Ft + 1 + Fi, 0:H] = np.asarray(w_img)
        slab[Ft + 1 + Fi, 0:H] = b_img
        slab[self._k_pad:self._k_pad + H, 0:O] = np.asarray(w_out)
        v0 = self._k_pad + H
        slab[v0 + 0, 0:H] = g_txt
        slab[v0 + 1, 0:H] = beta_txt
        slab[v0 + 2, 0:H] = g_img
        slab[v0 + 3, 0:H] = beta_img
        slab[v0 + 4, 0:O] = b_out
        self.param_slab = jnp.asarray(slab)

        self._p_cache = {}                 # pooling matrices keyed by (B, S1, N)

    def trans(self, x):                    # identity, as in the PyTorch module
        return x

    # Constant pooling matrix: rows 0..B-1 fusion (seq mean + img mean),
    # rows B..2B-1 ct_text (full-S1 mean), rows 2B..3B-1 ct_img (img mean).
    def _pooling_matrix(self, B, S1, N):
        key = (B, S1, N)
        if key not in self._p_cache:
            rows_t = B * S1
            R = rows_t + B * N
            P = np.zeros((3 * B, R), np.float32)
            for b in range(B):
                P[b, b * S1 + 1: b * S1 + 1 + self.seq_len] = 1.0 / self.seq_len
                P[b, rows_t + b * N: rows_t + (b + 1) * N] = 1.0 / N
                P[B + b, b * S1: (b + 1) * S1] = 1.0 / S1
                P[2 * B + b, rows_t + b * N: rows_t + (b + 1) * N] = 1.0 / N
            self._p_cache[key] = jnp.asarray(P)
        return self._p_cache[key]

    def _cost(self, B, R, training):
        H, O = self.hidden_size, self.output_size
        flops = 2 * (R * self._k_pad * H + 3 * B * R * H + B * H * O)
        transcendentals = R                        # LN rsqrt per row
        bytes_acc = 4 * (R * self._k_pad + self.param_slab.size + 3 * B * R + B * O)
        if training:
            flops += 2 * (2 * B) * (2 * B) * H
            transcendentals += (2 * B) * (2 * B) + 6 * B
            bytes_acc += 4 * (2 * B * O + O)
        return pl.CostEstimate(flops=flops, transcendentals=transcendentals,
                               bytes_accessed=int(bytes_acc))

    def __call__(self, bert_feat, img, bert_mask=None, pos_feats=None, neg_feats=None):
        f32 = jnp.float32
        H, O = self.hidden_size, self.output_size
        Ft, Fi = self.text_feat_size, self.img_feat_size

        B = img.shape[0]
        img3 = img.reshape(B, -1, Fi)              # torch .view of the input
        N = img3.shape[1]
        S1 = bert_feat.shape[1]
        assert S1 >= self.seq_len + 1

        rows_t, rows_i = B * S1, B * N
        K = Ft + 1 + Fi + 1
        k_pad = self._k_pad

        # Flatten to 2D at the XLA boundary + assemble the block-diagonal design
        # matrix (with per-branch bias columns) -- no in-kernel relayouts.
        xt = bert_feat.reshape(rows_t, Ft).astype(f32)
        xi = img3.reshape(rows_i, Fi).astype(f32)
        top = jnp.concatenate(
            [xt, jnp.ones((rows_t, 1), f32),
             jnp.zeros((rows_t, k_pad - Ft - 1), f32)], axis=1)
        bot = jnp.concatenate(
            [jnp.zeros((rows_i, Ft + 1), f32), xi, jnp.ones((rows_i, 1), f32),
             jnp.zeros((rows_i, k_pad - K), f32)], axis=1)
        x_aug = jnp.concatenate([top, bot], axis=0)            # (R, K_pad)

        p_mat = self._pooling_matrix(B, S1, N)                 # (3B, R) constant

        if bert_mask is not None:
            # TODO(synk): bert_mask is only consumed by the missing attention
            # submodules (WordLevel/PhraseLevel/SentLevel); unused here.
            pass
        attn_w, attn_p = 0, 0

        if pos_feats is None or neg_feats is None:
            # Inference: one fused kernel, 3 input DMAs, 1 output DMA.
            query = pl.pallas_call(
                functools.partial(_infer_kernel, hidden=H, out_size=O,
                                  rows_t=rows_t),
                out_shape=jax.ShapeDtypeStruct((B, O), f32),
                in_specs=[_VMEM, _VMEM, _VMEM],
                out_specs=_VMEM,
                cost_estimate=self._cost(B, rows_t + rows_i, training=False),
            )(x_aug, self.param_slab, p_mat)
            return query, (attn_w, attn_p)

        # Training: pack pos/neg into one buffer; single fused kernel whose one
        # output tile carries both query (rows 0..B-1) and the loss (row B, col 0).
        # NOTE: the torch code normalizes undefined `cl_*` vars (a typo); we
        # normalize the intended mean-pooled ct_* features inside the kernel.
        posneg = jnp.concatenate(
            [self.trans(pos_feats).reshape(B, O),              # .squeeze(): n_pos=1
             self.trans(neg_feats).reshape(B, O)], axis=0).astype(f32)
        out = pl.pallas_call(
            functools.partial(_train_kernel, hidden=H, out_size=O, rows_t=rows_t,
                              inv_temp=1.0 / self.temperature,
                              diag_exp=float(math.exp(1.0 / self.temperature)),
                              margin=self.loss_margin),
            out_shape=jax.ShapeDtypeStruct((B + 1, O), f32),
            in_specs=[_VMEM, _VMEM, _VMEM, _VMEM],
            out_specs=_VMEM,
            cost_estimate=self._cost(B, rows_t + rows_i, training=True),
        )(x_aug, self.param_slab, p_mat, posneg)
        # TODO(synk): pallas_call is not autodifferentiable; training needs a
        # custom_vjp + backward kernel.
        return out[B, 0], out[0:B], (attn_w, attn_p)


# -------------------------------------- main ---------------------------------------

if __name__ == "__main__":
    key = jax.random.PRNGKey(0)
    k1, k2, k3, k4, kparam = jax.random.split(key, 5)

    B, seq_len, hidden, out_sz = 2, 8, 32, 32
    text_feat, img_feat, n_img = 48, 40, 4

    bert_feat = jax.random.normal(k1, (B, seq_len + 1, text_feat), jnp.float32)
    img = jax.random.normal(k2, (B, n_img, img_feat), jnp.float32)
    bert_mask = jnp.ones((B, seq_len + 1), jnp.float32)
    pos_feats = jax.random.normal(k3, (B, 1, out_sz), jnp.float32)
    neg_feats = jax.random.normal(k4, (B, 1, out_sz), jnp.float32)

    model = NELModelPallas(kparam, hidden_size=hidden, output_size=out_sz,
                           seq_len=seq_len, text_feat_size=text_feat,
                           img_feat_size=img_feat, loss_margin=0.5)

    # inference path (pos/neg None): single fused kernel
    query, (attn_w, attn_p) = model(bert_feat, img, bert_mask)
    # training path (triplet + contrastive loss): single fused kernel
    loss, query2, _ = model(bert_feat, img, bert_mask, pos_feats, neg_feats)

    jax.block_until_ready((query, query2, loss))
    assert query.shape == (B, out_sz)
    assert query2.shape == (B, out_sz)
    assert loss.shape == ()
    assert bool(jnp.isfinite(loss))
    print("KERNEL_OK")
</pallas_src>

<mosaic_0001>
module attributes {stable_mosaic.version = 11 : i64} {
  func.func @_infer_kernel(%arg0: memref<26x96xf32, #tpu.memory_space<vmem>>, %arg1: memref<136x32xf32, #tpu.memory_space<vmem>>, %arg2: memref<6x26xf32, #tpu.memory_space<vmem>>, %arg3: memref<2x32xf32, #tpu.memory_space<vmem>>) attributes {dimension_semantics = [], scalar_prefetch = 0 : i64, scratch_operands = 0 : i64, tpu.core_type = #tpu.core_type<tc>} {
    %c0 = arith.constant 0 : index
    %c0_0 = arith.constant 0 : index
    %0 = vector.load %arg1[%c0, %c0_0] : memref<136x32xf32, #tpu.memory_space<vmem>>, vector<136x32xf32>
    %1 = vector.extract_strided_slice %0 {offsets = [0, 0], sizes = [96, 32], strides = [1, 1]} : vector<136x32xf32> to vector<96x32xf32>
    %2 = vector.extract_strided_slice %0 {offsets = [96, 0], sizes = [32, 32], strides = [1, 1]} : vector<136x32xf32> to vector<32x32xf32>
    %3 = vector.extract_strided_slice %0 {offsets = [128, 0], sizes = [1, 32], strides = [1, 1]} : vector<136x32xf32> to vector<1x32xf32>
    %4 = vector.extract_strided_slice %0 {offsets = [129, 0], sizes = [1, 32], strides = [1, 1]} : vector<136x32xf32> to vector<1x32xf32>
    %5 = vector.extract_strided_slice %0 {offsets = [130, 0], sizes = [1, 32], strides = [1, 1]} : vector<136x32xf32> to vector<1x32xf32>
    %6 = vector.extract_strided_slice %0 {offsets = [131, 0], sizes = [1, 32], strides = [1, 1]} : vector<136x32xf32> to vector<1x32xf32>
    %7 = vector.extract_strided_slice %0 {offsets = [132, 0], sizes = [1, 32], strides = [1, 1]} : vector<136x32xf32> to vector<1x32xf32>
    %c0_1 = arith.constant 0 : index
    %c0_2 = arith.constant 0 : index
    %8 = vector.load %arg0[%c0_1, %c0_2] : memref<26x96xf32, #tpu.memory_space<vmem>>, vector<26x96xf32>
    %cst = arith.constant dense<0.000000e+00> : vector<26x32xf32>
    %9 = tpu.matmul %8, %1, %cst {dimension_numbers = #tpu.dot_dimension_numbers<[1], [0], [0], [1], [0, 0, 1, 1], [], []>} : vector<26x96xf32>, vector<96x32xf32>, vector<26x32xf32> -> vector<26x32xf32>
    %cst_3 = arith.constant 0.000000e+00 : f32
    %10 = vector.broadcast %cst_3 : f32 to vector<26x32xf32>
    %11 = arith.maximumf %9, %10 : vector<26x32xf32>
    %cst_4 = arith.constant dense<0.000000e+00> : vector<26xf32>
    %12 = vector.multi_reduction <add>, %11, %cst_4 [1] : vector<26x32xf32> to vector<26xf32>
    %13 = vector.shape_cast %12 : vector<26xf32> to vector<26x1xf32>
    %cst_5 = arith.constant 3.200000e+01 : f32
    %14 = vector.broadcast %cst_5 : f32 to vector<26x1xf32>
    %15 = arith.divf %13, %14 : vector<26x1xf32>
    %16 = vector.broadcast %15 : vector<26x1xf32> to vector<26x32xf32>
    %17 = arith.subf %11, %16 : vector<26x32xf32>
    %18 = arith.mulf %17, %17 : vector<26x32xf32>
    %cst_6 = arith.constant dense<0.000000e+00> : vector<26xf32>
    %19 = vector.multi_reduction <add>, %18, %cst_6 [1] : vector<26x32xf32> to vector<26xf32>
    %20 = vector.shape_cast %19 : vector<26xf32> to vector<26x1xf32>
    %cst_7 = arith.constant 3.200000e+01 : f32
    %21 = vector.broadcast %cst_7 : f32 to vector<26x1xf32>
    %22 = arith.divf %20, %21 : vector<26x1xf32>
    %23 = vector.broadcast %15 : vector<26x1xf32> to vector<26x32xf32>
    %24 = arith.subf %11, %23 : vector<26x32xf32>
    %cst_8 = arith.constant 9.99999974E-6 : f32
    %25 = vector.broadcast %cst_8 : f32 to vector<26x1xf32>
    %26 = arith.addf %22, %25 : vector<26x1xf32>
    %27 = math.rsqrt %26 : vector<26x1xf32>
    %28 = vector.broadcast %27 : vector<26x1xf32> to vector<26x32xf32>
    %29 = arith.mulf %24, %28 : vector<26x32xf32>
    %30 = tpu.iota {dimensions = array<i32: 0>} : vector<26x32xi32>
    %c18_i32 = arith.constant 18 : i32
    %31 = vector.broadcast %c18_i32 : i32 to vector<26x32xi32>
    %32 = arith.cmpi slt, %30, %31 : vector<26x32xi32>
    %33 = vector.shape_cast %3 : vector<1x32xf32> to vector<1x32xf32>
    %34 = vector.broadcast %33 : vector<1x32xf32> to vector<26x32xf32>
    %35 = vector.shape_cast %5 : vector<1x32xf32> to vector<1x32xf32>
    %36 = vector.broadcast %35 : vector<1x32xf32> to vector<26x32xf32>
    %37 = arith.select %32, %34, %36 : vector<26x32xi1>, vector<26x32xf32>
    %38 = arith.mulf %29, %37 : vector<26x32xf32>
    %39 = vector.shape_cast %4 : vector<1x32xf32> to vector<1x32xf32>
    %40 = vector.broadcast %39 : vector<1x32xf32> to vector<26x32xf32>
    %41 = vector.shape_cast %6 : vector<1x32xf32> to vector<1x32xf32>
    %42 = vector.broadcast %41 : vector<1x32xf32> to vector<26x32xf32>
    %43 = arith.select %32, %40, %42 : vector<26x32xi1>, vector<26x32xf32>
    %44 = arith.addf %38, %43 : vector<26x32xf32>
    %c0_9 = arith.constant 0 : index
    %c0_10 = arith.constant 0 : index
    %45 = vector.load %arg2[%c0_9, %c0_10] : memref<6x26xf32, #tpu.memory_space<vmem>>, vector<6x26xf32>
    %cst_11 = arith.constant dense<0.000000e+00> : vector<6x32xf32>
    %46 = tpu.matmul %45, %44, %cst_11 {dimension_numbers = #tpu.dot_dimension_numbers<[1], [0], [0], [1], [0, 0, 1, 1], [], []>} : vector<6x26xf32>, vector<26x32xf32>, vector<6x32xf32> -> vector<6x32xf32>
    %47 = vector.extract_strided_slice %46 {offsets = [0, 0], sizes = [2, 32], strides = [1, 1]} : vector<6x32xf32> to vector<2x32xf32>
    %cst_12 = arith.constant dense<0.000000e+00> : vector<2x32xf32>
    %48 = tpu.matmul %47, %2, %cst_12 {dimension_numbers = #tpu.dot_dimension_numbers<[1], [0], [0], [1], [0, 0, 1, 1], [], []>} : vector<2x32xf32>, vector<32x32xf32>, vector<2x32xf32> -> vector<2x32xf32>
    %49 = vector.broadcast %7 : vector<1x32xf32> to vector<2x32xf32>
    %50 = arith.addf %48, %49 : vector<2x32xf32>
    %c0_13 = arith.constant 0 : index
    %c0_14 = arith.constant 0 : index
    %51 = vector.load %arg3[%c0_13, %c0_14] : memref<2x32xf32, #tpu.memory_space<vmem>>, vector<2x32xf32>
    tpu.vector_store %arg3[%c0_13, %c0_14], %50 {strides = array<i32>} : memref<2x32xf32, #tpu.memory_space<vmem>>, vector<2x32xf32>,
    return
  }
}

</mosaic_0001>

<llo_original>
// kernel: tpu_custom_call.1
$region0: #{tpu_custom_call.1}
  #allocation0 [shape = 'u32[]', space=smem, size = 0x4, offset = 0x4, fixed_abs, tag = 'smem constant byte address 0x4 - core index']
  #allocation1 [shape = 'u32[144,128]{1,0:T(1,128)}', space=vmem, size = 0x12000, scoped, tag = 'internal scratch']
  %s0 = inlined_call_operand.vmem [shape: f32[26,96], index: 0, kind: input, shape index: {}]
  %s1 = inlined_call_operand.vmem [shape: f32[136,32], index: 1, kind: input, shape index: {}]
  %s2 = inlined_call_operand.vmem [shape: f32[6,26], index: 2, kind: input, shape index: {}]
  %s3 = inlined_call_operand.hbm [shape: f32[2,32], index: 3, kind: output, shape index: {}]
  %s4 = sld [smem:[#allocation0]]
  $region22: #{tpu_custom_call.1} parent=0
    _
  %s6 = ssub.s32 1, %s4
  %s7 = scalar_select 0, %s6, %s4
  $region1: #{tpu_custom_call.1} parent=0
    #allocation2 [shape = 'u8[1024]{0}', space=vmem, size = 0x400, scoped, tag = 'output window, operand 0, single buffered']
    #allocation3 [shape = 's32[1]{0}', space=sflag, size = 0x4, scoped, tag = 'scoped memory for tpu_custom_call.1']
    %8 = vsyncpa [#allocation3], 0
    // Predicated region
    $region2: #{tpu_custom_call.1} parent=1 // pred_check
      _
    $region3: #{tpu_custom_call.1} parent=1 // pred_check_branch
      %10 = sbr.rel (0) target = $region5
    $region4: #{tpu_custom_call.1} parent=1 // pred_region
      _
    $region5: #{tpu_custom_call.1} parent=1 // pred_fallthru
      _
    // Predicated region
    $region6: #{tpu_custom_call.1} parent=1 // pred_check
      _
    $region7: #{tpu_custom_call.1} parent=1 // pred_check_branch
      %12 = sbr.rel (0) target = $region9
    $region8: #{tpu_custom_call.1} parent=1 // pred_region
      _
    $region9: #{tpu_custom_call.1} parent=1 // pred_fallthru
      _
    // Predicated region
    $region10: #{tpu_custom_call.1} parent=1 // pred_check
      _
    $region11: #{tpu_custom_call.1} parent=1 // pred_check_branch
      %14 = sbr.rel (0) target = $region13
    $region12: #{tpu_custom_call.1} parent=1 // pred_region
      _
    $region13: #{tpu_custom_call.1} parent=1 // pred_fallthru
      _
    %v15 = vld [vmem:[%s1] sm:$0xff]
    %v16 = vld [vmem:[%s1 + $0x8] sm:$0xff]
    %v17 = vld [vmem:[%s1 + $0x10] sm:$0xff]
    %v18 = vld [vmem:[%s1 + $0x18] sm:$0xff]
    %v19 = vld [vmem:[%s1 + $0x20] sm:$0xff]
    %v20 = vld [vmem:[%s1 + $0x28] sm:$0xff]
    %v21 = vld [vmem:[%s1 + $0x30] sm:$0xff]
    %v22 = vld [vmem:[%s1 + $0x38] sm:$0xff]
    %v23 = vld [vmem:[%s1 + $0x40] sm:$0xff]
    %v24 = vld [vmem:[%s1 + $0x48] sm:$0xff]
    %v25 = vld [vmem:[%s1 + $0x50] sm:$0xff]
    %v26 = vld [vmem:[%s1 + $0x58] sm:$0xff]
    %v27 = vld [vmem:[%s1 + $0x60] sm:$0xff]
    %v28 = vld [vmem:[%s1 + $0x68] sm:$0xff]
    %v29 = vld [vmem:[%s1 + $0x70] sm:$0xff]
    %v30 = vld [vmem:[%s1 + $0x78] sm:$0xff]
    %v31 = vld [vmem:[%s1 + $0x80] sm:$0xff]
    %v32 = vld [vmem:[%s0] sm:$0xff]
    %v33 = vld [vmem:[%s0 + $0x8] sm:$0xff]
    %v34 = vld [vmem:[%s0 + $0x10] sm:$0xff]
    %v35 = vld [vmem:[%s0 + $0x18] sm:$0x3]
    %vm36 = vcmask 785408
    %v38 = vsel %vm36, %v32, 0
    %v41 = vsel %vm36, %v33, 0
    %v44 = vsel %vm36, %v34, 0
    %v47 = vsel %vm36, %v35, 0
    %49 = vmatprep.subr.mxu0 0.0
    %50 = vmatpush1.msra.mxu0 %v15
    %51 = vmatprep.subr.mxu0 0.0
    %52 = vmatpush1.msra.mxu0 %v16
    %53 = vmatprep.subr.mxu0 0.0
    %54 = vmatpush1.msra.mxu0 %v17
    %55 = vmatprep.subr.mxu0 0.0
    %56 = vmatpush1.msra.mxu0 %v18
    %57 = vmatprep.subr.mxu0 0.0
    %58 = vmatpush1.msra.mxu0 %v19
    %59 = vmatprep.subr.mxu0 0.0
    %60 = vmatpush1.msra.mxu0 %v20
    %61 = vmatprep.subr.mxu0 0.0
    %62 = vmatpush1.msra.mxu0 %v21
    %63 = vmatprep.subr.mxu0 0.0
    %64 = vmatpush1.msra.mxu0 %v22
    %65 = vmatprep.subr.mxu0 0.0
    %66 = vmatpush1.msra.mxu0 %v23
    %67 = vmatprep.subr.mxu0 0.0
    %68 = vmatpush1.msra.mxu0 %v24
    %69 = vmatprep.subr.mxu0 0.0
    %70 = vmatpush1.msra.mxu0 %v25
    %71 = vmatprep.subr.mxu0 0.0
    %72 = vmatpush1.msra.mxu0 %v26
    %73 = vmatprep.subr.mxu0 0.0
    %74 = vmatpush1.msra.mxu0 0.0
    %75 = vmatprep.subr.mxu0 0.0
    %76 = vmatpush1.msra.mxu0 0.0
    %77 = vmatprep.subr.mxu0 0.0
    %78 = vmatpush1.msra.mxu0 0.0
    %79 = vmatprep.subr.mxu0 0.0
    %80 = vmatpush1.msra.mxu0 0.0
    %81 = vmatprep.subr.mxu0 0.0
    %82 = vmatpush1.msra.mxu0 0.0
    %83 = vmatprep.subr.mxu0 0.0
    %84 = vmatpush1.msra.mxu0 0.0
    %85 = vmatprep.subr.mxu0 0.0
    %86 = vmatpush1.msra.mxu0 0.0
    %87 = vmatprep.subr.mxu0 0.0
    %88 = vmatpush1.msra.mxu0 0.0
    %89 = vmatprep.subr.mxu0 0.0
    %90 = vmatpush1.msra.mxu0 0.0
    %91 = vmatprep.subr.mxu0 0.0
    %92 = vmatpush1.msra.mxu0 0.0
    %93 = vmatprep.subr.mxu0 0.0
    %94 = vmatpush1.msra.mxu0 0.0
    %95 = vmatprep.subr.mxu0 0.0
    %96 = vmatpush1.msra.mxu0 0.0
    %97 = vmatprep.subr.mxu0 0.0
    %98 = vmatpush1.msra.mxu0 0.0
    %99 = vmatprep.subr.mxu0 0.0
    %100 = vmatpush1.msra.mxu0 0.0
    %101 = vmatprep.subr.mxu0 0.0
    %102 = vmatpush1.msra.mxu0 0.0
    %103 = vmatprep.subr.mxu0 0.0
    %104 = vmatpush1.msra.mxu0 0.0
    %105 = vmatprep.subr.mxu0 0.0
    %106 = vmatpush1.msra.mxu0 0.0
    %107 = vmatprep.subr.mxu0 0.0
    %108 = vmatpush1.msra.mxu0 0.0
    %109 = vmatprep.subr.mxu0 0.0
    %110 = vmatpush1.msra.mxu0 0.0
    %111 = vmatprep.subr.mxu0 0.0
    %112 = vmatpush1.msra.mxu0 0.0
    %113 = vmatprep.mubr.f32.mxu0 0.0
    %114 = vmatmul.mubr.f32.gmra.mrb[0].mxu0 %v38
    %v115 = vpop.f32.mrb[0].mxu0
    %v116 = vadd.f32 0.0, %v115
    %v117 = vpop.f32.mrb[0].mxu0
    %118 = vmatprep.mubr.f32.mxu0 0.0
    %119 = vmatmul.mubr.f32.gmra.mrb[0].mxu0 %v41
    %v120 = vpop.f32.mrb[0].mxu0
    %v121 = vadd.f32 0.0, %v120
    %v122 = vpop.f32.mrb[0].mxu0
    %123 = vmatprep.mubr.f32.mxu0 0.0
    %124 = vmatmul.mubr.f32.gmra.mrb[0].mxu0 %v44
    %v125 = vpop.f32.mrb[0].mxu0
    %v126 = vadd.f32 0.0, %v125
    %v127 = vpop.f32.mrb[0].mxu0
    %128 = vmatprep.mubr.f32.mxu0 0.0
    %129 = vmatmul.mubr.f32.gmra.mrb[0].mxu0 %v47
    %v130 = vpop.f32.mrb[0].mxu0
    %v131 = vadd.f32 0.0, %v130
    %v132 = vpop.f32.mrb[0].mxu0
    %133 = vdwg.mxu0
    %v134 = vmax.f32 %v116, 0.0
    %v135 = vmax.f32 %v121, 0.0
    %v136 = vmax.f32 %v126, 0.0
    %v137 = vmax.f32 %v131, 0.0
    %vm138 = vcmask 261120
    %v139 = vsel %vm138, %v134, 0.0
    %140 = vadd.xlane.f32.xlu0 %v139
    %v141 = vpop.xlane.xlu0 %140
    %v142 = vsel %vm138, %v135, 0.0
    %143 = vadd.xlane.f32.xlu0 %v142
    %v144 = vpop.xlane.xlu0 %143
    %v145 = vsel %vm138, %v136, 0.0
    %146 = vadd.xlane.f32.xlu0 %v145
    %v147 = vpop.xlane.xlu0 %146
    %vm148 = vcmask 254976
    %v149 = vsel %vm148, %v137, 0.0
    %150 = vadd.xlane.f32.xlu0 %v149
    %v151 = vpop.xlane.xlu0 %150
    %v152 = vrcp.pop 32.0
    %v153 = vmul.f32 %v141, %v152
    %v154 = vmul.f32 %v144, %v152
    %v155 = vmul.f32 %v147, %v152
    %v156 = vmul.f32 %v151, %v152
    %v157 = vsub.f32 %v134, %v153
    %v158 = vsub.f32 %v135, %v154
    %v159 = vsub.f32 %v136, %v155
    %v160 = vsub.f32 %v137, %v156
    %v161 = vmul.f32 %v157, %v157
    %v162 = vmul.f32 %v158, %v158
    %v163 = vmul.f32 %v159, %v159
    %v164 = vmul.f32 %v160, %v160
    %v165 = vsel %vm138, %v161, 0.0
    %166 = vadd.xlane.f32.xlu0 %v165
    %v167 = vpop.xlane.xlu0 %166
    %v168 = vsel %vm138, %v162, 0.0
    %169 = vadd.xlane.f32.xlu0 %v168
    %v170 = vpop.xlane.xlu0 %169
    %v171 = vsel %vm138, %v163, 0.0
    %172 = vadd.xlane.f32.xlu0 %v171
    %v173 = vpop.xlane.xlu0 %172
    %v174 = vsel %vm148, %v164, 0.0
    %175 = vadd.xlane.f32.xlu0 %v174
    %v176 = vpop.xlane.xlu0 %175
    %v177 = vmul.f32 %v167, %v152
    %v178 = vmul.f32 %v170, %v152
    %v179 = vmul.f32 %v173, %v152
    %v180 = vmul.f32 %v176, %v152
    %v181 = vadd.f32 %v177, 1e-05
    %v182 = vadd.f32 %v178, 1e-05
    %v183 = vadd.f32 %v179, 1e-05
    %v184 = vadd.f32 %v180, 1e-05
    %v185 = vrsqrt.pop %v181
    %v186 = vrsqrt.pop %v182
    %v187 = vrsqrt.pop %v183
    %v188 = vrsqrt.pop %v184
    %v189 = vmul.f32 %v157, %v185
    %v190 = vmul.f32 %v158, %v186
    %v191 = vmul.f32 %v159, %v187
    %v192 = vmul.f32 %v160, %v188
    %v193 = vlaneseq
    %v194 = vshrl.u32 %v193, 7
    %v195 = vadd.s32 %v194, 8
    %v196 = vadd.s32 %v194, 16
    %v197 = vadd.s32 %v194, 24
    %vm198 = vcmp.lt.s32.totalorder %v194, 18
    %vm199 = vcmp.lt.s32.totalorder %v195, 18
    %vm200 = vcmp.lt.s32.totalorder %v196, 18
    %vm201 = vcmp.lt.s32.totalorder %v197, 18
    %v202 = vlaneseq
    %v203 = vshrl.u32 %v202, 7
    %v204 = vsub.s32 0, %v203
    %v205 = vrot.slane %v31, %v204
    %v206 = vlaneseq
    %v207 = vshrl.u32 %v206, 7
    %v208 = vsub.s32 2, %v207
    %v209 = vrot.slane %v31, %v208
    %v210 = vsel %vm198, %v205, %v209
    %v211 = vsel %vm199, %v205, %v209
    %v212 = vsel %vm200, %v205, %v209
    %v213 = vsel %vm201, %v205, %v209
    %v214 = vmul.f32 %v189, %v210
    %v215 = vmul.f32 %v190, %v211
    %v216 = vmul.f32 %v191, %v212
    %v217 = vmul.f32 %v192, %v213
    %v218 = vlaneseq
    %v219 = vshrl.u32 %v218, 7
    %v220 = vsub.s32 1, %v219
    %v221 = vrot.slane %v31, %v220
    %v222 = vlaneseq
    %v223 = vshrl.u32 %v222, 7
    %v224 = vsub.s32 3, %v223
    %v225 = vrot.slane %v31, %v224
    %v226 = vsel %vm198, %v221, %v225
    %v227 = vsel %vm199, %v221, %v225
    %v228 = vsel %vm200, %v221, %v225
    %v229 = vsel %vm201, %v221, %v225
    %v230 = vadd.f32 %v214, %v226
    %v231 = vadd.f32 %v215, %v227
    %v232 = vadd.f32 %v216, %v228
    %v233 = vadd.f32 %v217, %v229
    %v234 = vld [vmem:[%s2] sm:$0x3f]
    %vm235 = vcmask 211968
    %v237 = vsel %vm235, %v234, 0
    %vm239 = vcmask 1041408
    %v241 = vsel %vm239, %v233, 0
    %243 = vmatprep.subr.mxu0 0.0
    %244 = vmatpush1.msra.mxu0 %v230
    %245 = vmatprep.subr.mxu0 0.0
    %246 = vmatpush1.msra.mxu0 %v231
    %247 = vmatprep.subr.mxu0 0.0
    %248 = vmatpush1.msra.mxu0 %v232
    %249 = vmatprep.subr.mxu0 0.0
    %250 = vmatpush1.msra.mxu0 %v241
    %251 = vmatprep.subr.mxu0 0.0
    %252 = vmatpush1.msra.mxu0 0.0
    %253 = vmatprep.subr.mxu0 0.0
    %254 = vmatpush1.msra.mxu0 0.0
    %255 = vmatprep.subr.mxu0 0.0
    %256 = vmatpush1.msra.mxu0 0.0
    %257 = vmatprep.subr.mxu0 0.0
    %258 = vmatpush1.msra.mxu0 0.0
    %259 = vmatprep.subr.mxu0 0.0
    %260 = vmatpush1.msra.mxu0 0.0
    %261 = vmatprep.subr.mxu0 0.0
    %262 = vmatpush1.msra.mxu0 0.0
    %263 = vmatprep.subr.mxu0 0.0
    %264 = vmatpush1.msra.mxu0 0.0
    %265 = vmatprep.subr.mxu0 0.0
    %266 = vmatpush1.msra.mxu0 0.0
    %267 = vmatprep.subr.mxu0 0.0
    %268 = vmatpush1.msra.mxu0 0.0
    %269 = vmatprep.subr.mxu0 0.0
    %270 = vmatpush1.msra.mxu0 0.0
    %271 = vmatprep.subr.mxu0 0.0
    %272 = vmatpush1.msra.mxu0 0.0
    %273 = vmatprep.subr.mxu0 0.0
    %274 = vmatpush1.msra.mxu0 0.0
    %275 = vmatprep.subr.mxu0 0.0
    %276 = vmatpush1.msra.mxu0 0.0
    %277 = vmatprep.subr.mxu0 0.0
    %278 = vmatpush1.msra.mxu0 0.0
    %279 = vmatprep.subr.mxu0 0.0
    %280 = vmatpush1.msra.mxu0 0.0
    %281 = vmatprep.subr.mxu0 0.0
    %282 = vmatpush1.msra.mxu0 0.0
    %283 = vmatprep.subr.mxu0 0.0
    %284 = vmatpush1.msra.mxu0 0.0
    %285 = vmatprep.subr.mxu0 0.0
    %286 = vmatpush1.msra.mxu0 0.0
    %287 = vmatprep.subr.mxu0 0.0
    %288 = vmatpush1.msra.mxu0 0.0
    %289 = vmatprep.subr.mxu0 0.0
    %290 = vmatpush1.msra.mxu0 0.0
    %291 = vmatprep.subr.mxu0 0.0
    %292 = vmatpush1.msra.mxu0 0.0
    %293 = vmatprep.subr.mxu0 0.0
    %294 = vmatpush1.msra.mxu0 0.0
    %295 = vmatprep.subr.mxu0 0.0
    %296 = vmatpush1.msra.mxu0 0.0
    %297 = vmatprep.subr.mxu0 0.0
    %298 = vmatpush1.msra.mxu0 0.0
    %299 = vmatprep.subr.mxu0 0.0
    %300 = vmatpush1.msra.mxu0 0.0
    %301 = vmatprep.subr.mxu0 0.0
    %302 = vmatpush1.msra.mxu0 0.0
    %303 = vmatprep.subr.mxu0 0.0
    %304 = vmatpush1.msra.mxu0 0.0
    %305 = vmatprep.subr.mxu0 0.0
    %306 = vmatpush1.msra.mxu0 0.0
    %307 = vmatprep.mubr.f32.mxu0 0.0
    %308 = vmatmul.mubr.f32.gmra.mrb[0].mxu0 %v237
    %v309 = vpop.f32.mrb[0].mxu0
    %v310 = vadd.f32 0.0, %v309
    %v311 = vpop.f32.mrb[0].mxu0
    %312 = vdwg.mxu0
    %v313 = vlaneseq
    %v314 = vshrl.u32 %v313, 7
    %v315 = vsub.s32 4, %v314
    %v316 = vrot.slane %v31, %v315
    %v318 = vsel %vm138, %v310, 0
    %320 = vmatprep.subr.mxu0 0.0
    %321 = vmatpush1.msra.mxu0 %v27
    %322 = vmatprep.subr.mxu0 0.0
    %323 = vmatpush1.msra.mxu0 %v28
    %324 = vmatprep.subr.mxu0 0.0
    %325 = vmatpush1.msra.mxu0 %v29
    %326 = vmatprep.subr.mxu0 0.0
    %327 = vmatpush1.msra.mxu0 %v30
    %328 = vmatprep.subr.mxu0 0.0
    %329 = vmatpush1.msra.mxu0 0.0
    %330 = vmatprep.subr.mxu0 0.0
    %331 = vmatpush1.msra.mxu0 0.0
    %332 = vmatprep.subr.mxu0 0.0
    %333 = vmatpush1.msra.mxu0 0.0
    %334 = vmatprep.subr.mxu0 0.0
    %335 = vmatpush1.msra.mxu0 0.0
    %336 = vmatprep.subr.mxu0 0.0
    %337 = vmatpush1.msra.mxu0 0.0
    %338 = vmatprep.subr.mxu0 0.0
    %339 = vmatpush1.msra.mxu0 0.0
    %340 = vmatprep.subr.mxu0 0.0
    %341 = vmatpush1.msra.mxu0 0.0
    %342 = vmatprep.subr.mxu0 0.0
    %343 = vmatpush1.msra.mxu0 0.0
    %344 = vmatprep.subr.mxu0 0.0
    %345 = vmatpush1.msra.mxu0 0.0
    %346 = vmatprep.subr.mxu0 0.0
    %347 = vmatpush1.msra.mxu0 0.0
    %348 = vmatprep.subr.mxu0 0.0
    %349 = vmatpush1.msra.mxu0 0.0
    %350 = vmatprep.subr.mxu0 0.0
    %351 = vmatpush1.msra.mxu0 0.0
    %352 = vmatprep.subr.mxu0 0.0
    %353 = vmatpush1.msra.mxu0 0.0
    %354 = vmatprep.subr.mxu0 0.0
    %355 = vmatpush1.msra.mxu0 0.0
    %356 = vmatprep.subr.mxu0 0.0
    %357 = vmatpush1.msra.mxu0 0.0
    %358 = vmatprep.subr.mxu0 0.0
    %359 = vmatpush1.msra.mxu0 0.0
    %360 = vmatprep.subr.mxu0 0.0
    %361 = vmatpush1.msra.mxu0 0.0
    %362 = vmatprep.subr.mxu0 0.0
    %363 = vmatpush1.msra.mxu0 0.0
    %364 = vmatprep.subr.mxu0 0.0
    %365 = vmatpush1.msra.mxu0 0.0
    %366 = vmatprep.subr.mxu0 0.0
    %367 = vmatpush1.msra.mxu0 0.0
    %368 = vmatprep.subr.mxu0 0.0
    %369 = vmatpush1.msra.mxu0 0.0
    %370 = vmatprep.subr.mxu0 0.0
    %371 = vmatpush1.msra.mxu0 0.0
    %372 = vmatprep.subr.mxu0 0.0
    %373 = vmatpush1.msra.mxu0 0.0
    %374 = vmatprep.subr.mxu0 0.0
    %375 = vmatpush1.msra.mxu0 0.0
    %376 = vmatprep.subr.mxu0 0.0
    %377 = vmatpush1.msra.mxu0 0.0
    %378 = vmatprep.subr.mxu0 0.0
    %379 = vmatpush1.msra.mxu0 0.0
    %380 = vmatprep.subr.mxu0 0.0
    %381 = vmatpush1.msra.mxu0 0.0
    %382 = vmatprep.subr.mxu0 0.0
    %383 = vmatpush1.msra.mxu0 0.0
    %384 = vmatprep.mubr.f32.mxu0 0.0
    %385 = vmatmul.mubr.f32.gmra.mrb[0].mxu0 %v318
    %v386 = vpop.f32.mrb[0].mxu0
    %v387 = vadd.f32 %v316, %v386
    %v388 = vpop.f32.mrb[0].mxu0
    %389 = vdwg.mxu0
    %390 = vst.msk [vmem:[#allocation2] sm:$0x3] %vm148, %v387
    // Predicated region
    $region14: #{tpu_custom_call.1} parent=1 // pred_check
      _
    $region15: #{tpu_custom_call.1} parent=1 // pred_check_branch
      %392 = sbr.rel (0) target = $region17
    $region16: #{tpu_custom_call.1} parent=1 // pred_region
      %s394 = ssub.s32 32, 32
      %395 = vsyncadd [#allocation3], %s394
      %s397 = sshll.u32 [#allocation2], 4
      %s398 = int_to_ptr.vmem [resolvable:$true] %s397
      %400 = dma.vmem_to_hbm [thread:$0]  %s398, 32, %s3, [#allocation3]
    $region17: #{tpu_custom_call.1} parent=1 // pred_fallthru
      _
    // Predicated region
    $region18: #{tpu_custom_call.1} parent=1 // pred_check
      _
    $region19: #{tpu_custom_call.1} parent=1 // pred_check_branch
      %402 = sbr.rel (0) target = $region21
    $region20: #{tpu_custom_call.1} parent=1 // pred_region
      %403 = dma.done [#allocation3], 32
    $region21: #{tpu_custom_call.1} parent=1 // pred_fallthru
      _
    %404 = vsyncpa [#allocation3], 1

</llo_original>
